<compile_context>
chip_gen: v6e
topology: v6e:2x2x1
jax: 0.10.0
libtpu: 0.0.40
codegen_flags: <defaults>
</compile_context>

<pallas_src>
import functools

import jax
import jax.numpy as jnp
from jax.experimental import pallas as pl
from jax.experimental.pallas import tpu as pltpu


def _gdice_kernel(p_ref, t_ref, o_ref, spt_ref, sp_ref, st_ref, *,
                  valid_cols, tile_m, slice_m, tiles_per_split, ragged,
                  unroll):
    c = pl.program_id(0)          # feature-range split (parallel / megacore)
    k = pl.program_id(1)          # tile within this split (arbitrary)

    @pl.when(k == 0)
    def _():
        spt_ref[...] = jnp.zeros_like(spt_ref)
        sp_ref[...] = jnp.zeros_like(sp_ref)
        st_ref[...] = jnp.zeros_like(st_ref)

    # Unclamped global column offset of this block (used for ragged masking;
    # duplicate clamped blocks past the end get fully masked to zero).
    offset = (c * tiles_per_split + k) * tile_m
    n_slices = tile_m // slice_m
    lane_tiles = slice_m // 128

    def accumulate(masked):
        def body(j, carry):
            acc_pt, acc_p, acc_t = carry
            start = pl.multiple_of(j * slice_m, slice_m)
            # Per-slice load + cast: keeps live vregs tiny (no spills), and
            # bf16 inputs only widen slice-by-slice.
            ps = p_ref[:, pl.ds(start, slice_m)].astype(jnp.float32)
            ts = t_ref[:, pl.ds(start, slice_m)].astype(jnp.float32)
            if masked:
                col = (jax.lax.broadcasted_iota(jnp.int32, ps.shape, 1)
                       + offset + start)
                in_bounds = col < valid_cols
                ps = jnp.where(in_bounds, ps, 0.0)
                ts = jnp.where(in_bounds, ts, 0.0)
            for s in range(lane_tiles):   # static, tiny (1 or 4 lane tiles)
                pss = ps[:, s * 128:(s + 1) * 128]
                tss = ts[:, s * 128:(s + 1) * 128]
                acc_pt = acc_pt + pss * tss
                acc_p = acc_p + pss
                acc_t = acc_t + tss
            return acc_pt, acc_p, acc_t

        init = (spt_ref[...], sp_ref[...], st_ref[...])
        acc_pt, acc_p, acc_t = jax.lax.fori_loop(
            0, n_slices, body, init, unroll=unroll)
        spt_ref[...] = acc_pt
        sp_ref[...] = acc_p
        st_ref[...] = acc_t

    if ragged:
        needs_mask = offset + tile_m > valid_cols

        @pl.when(jnp.logical_not(needs_mask))
        def _():
            accumulate(False)

        @pl.when(needs_mask)          # only boundary / duplicate blocks
        def _():
            accumulate(True)
    else:
        accumulate(False)

    @pl.when(k == pl.num_programs(1) - 1)
    def _():
        # Lane-dense partial sums for this split; cross-lane reduction and the
        # dice finalize happen in the wrapper (tiny).
        o_ref[0] = spt_ref[...]
        o_ref[1] = sp_ref[...]
        o_ref[2] = st_ref[...]


def generalized_dice1(y_pred, y_true, *, n_splits=2,
                      vmem_input_budget_bytes=24 * 1024 * 1024,
                      vmem_limit_bytes=32 * 1024 * 1024):
    assert y_pred.shape == y_true.shape, "predict & target shape don't match"
    n = int(y_pred.shape[0])
    m = 1
    for d in y_pred.shape[1:]:
        m *= int(d)

    itemsize = max(jnp.dtype(y_pred.dtype).itemsize,
                   jnp.dtype(y_true.dtype).itemsize)

    # --- Sublane packing: fold features into extra rows so every vreg sublane
    # carries real data even when N < 8 (f32) / N < 16 (bf16).
    target_rows = 8 if itemsize >= 4 else 16
    pack = 1
    while (n * pack < target_rows and m % (2 * pack) == 0
           and (m // (2 * pack)) >= 128):
        pack *= 2
    rows = n * pack
    cols = m // pack

    # Free, row-major reshape (same memory layout as torch .view).
    p = y_pred.reshape(rows, cols)
    t = y_true.reshape(rows, cols)

    # --- Tile sizing: multi-MiB per-block HBM transfers; VMEM budget counted
    # with sublane-padded rows (f32 -> 8, bf16 -> 16, int8 -> 32).
    sub = max(8, 32 // itemsize)
    rows_padded = ((rows + sub - 1) // sub) * sub
    cols_rounded = ((cols + 127) // 128) * 128

    per_buffer_bytes = vmem_input_budget_bytes // 4   # 2 inputs x 2 buffers
    max_cols = per_buffer_bytes // max(1, rows_padded * itemsize)
    tile_m = max(128, min(max_cols, cols_rounded))
    if tile_m >= 512:
        tile_m = (tile_m // 512) * 512
    else:
        tile_m = (tile_m // 128) * 128
    tile_m = max(128, tile_m)

    total_tiles = pl.cdiv(cols, tile_m)
    n_splits = max(1, min(n_splits, total_tiles))
    tiles_per_split = pl.cdiv(total_tiles, n_splits)
    needs_clamp = n_splits * tiles_per_split > total_tiles
    ragged = (cols % tile_m != 0) or needs_clamp

    slice_m = 512 if tile_m % 512 == 0 else 128
    n_slices = tile_m // slice_m
    unroll = 1
    for u in (8, 4, 2):
        if n_slices % u == 0:
            unroll = u
            break

    if needs_clamp:
        max_block = total_tiles - 1

        def in_index(ci, ki):
            # Clamp so no fully out-of-range block index is ever DMA'd; the
            # duplicated data is zeroed by the in-kernel ragged mask.
            return (0, jnp.minimum(ci * tiles_per_split + ki, max_block))
    else:
        def in_index(ci, ki):
            return (0, ci * tiles_per_split + ki)

    kernel = functools.partial(
        _gdice_kernel, valid_cols=cols, tile_m=tile_m, slice_m=slice_m,
        tiles_per_split=tiles_per_split, ragged=ragged, unroll=unroll)

    partial_sums = pl.pallas_call(
        kernel,
        out_shape=jax.ShapeDtypeStruct((n_splits * 3, rows, 128), jnp.float32),
        grid_spec=pltpu.PrefetchScalarGridSpec(
            num_scalar_prefetch=0,
            grid=(n_splits, tiles_per_split),
            in_specs=[
                pl.BlockSpec((rows, tile_m), in_index),
                pl.BlockSpec((rows, tile_m), in_index),
            ],
            out_specs=pl.BlockSpec((3, rows, 128), lambda ci, ki: (ci, 0, 0)),
            scratch_shapes=[
                pltpu.VMEM((rows, 128), jnp.float32),   # lane-wise sum(p * t)
                pltpu.VMEM((rows, 128), jnp.float32),   # lane-wise sum(p)
                pltpu.VMEM((rows, 128), jnp.float32),   # lane-wise sum(t)
            ],
        ),
        compiler_params=pltpu.CompilerParams(
            dimension_semantics=("parallel", "arbitrary"),
            vmem_limit_bytes=vmem_limit_bytes,
        ),
    )(p, t)

    # --- Finalize (tiny, done in XLA): fold splits, lanes, and packed rows.
    sums = partial_sums.reshape(n_splits, 3, rows, 128).sum(axis=(0, 3))
    sums = sums.reshape(3, n, pack).sum(axis=-1)        # (3, N)
    spt, sp, st = sums[0], sums[1], sums[2]

    w_p = 1.0 / (st * st)                                # 1 / sum(t)^2
    intersection = w_p * spt
    union = w_p * (sp + st)
    loss = 1.0 - 2.0 * (intersection / union)
    return jnp.mean(loss)


def _reference(y_pred, y_true):
    n = y_pred.shape[0]
    p = y_pred.reshape(n, -1).astype(jnp.float32)
    t = y_true.reshape(n, -1).astype(jnp.float32)
    w_p = 1.0 / jnp.square(t.sum(1))
    intersection = w_p * (p * t).sum(1)
    union = w_p * (p.sum(1) + t.sum(1))
    loss = 1.0 - 2.0 * (intersection / union)
    return loss.mean()


if __name__ == "__main__":
    key = jax.random.PRNGKey(0)
    k1, k2 = jax.random.split(key)
    # small NCHW inputs: batch=2, channels=4, spatial=16x16
    y_pred = jax.random.uniform(k1, (2, 4, 16, 16), dtype=jnp.float32)
    y_true = (jax.random.uniform(k2, (2, 4, 16, 16)) > 0.5).astype(jnp.float32)

    loss = generalized_dice1(y_pred, y_true)
    jax.block_until_ready(loss)

    ref = _reference(y_pred, y_true)
    assert jnp.allclose(loss, ref, rtol=1e-5, atol=1e-6), (loss, ref)
    print("KERNEL_OK")
</pallas_src>

<mosaic_0001>
module attributes {stable_mosaic.version = 11 : i64} {
  func.func @_gdice_kernel(%arg0: i32, %arg1: i32, %arg2: memref<8x256xf32, #tpu.memory_space<vmem>>, %arg3: memref<8x256xf32, #tpu.memory_space<vmem>>, %arg4: memref<3x8x128xf32, #tpu.memory_space<vmem>>, %arg5: memref<8x128xf32, #tpu.memory_space<vmem>>, %arg6: memref<8x128xf32, #tpu.memory_space<vmem>>, %arg7: memref<8x128xf32, #tpu.memory_space<vmem>>) attributes {dimension_semantics = [#tpu.dimension_semantics<parallel>, #tpu.dimension_semantics<arbitrary>], iteration_bounds = array<i64: 1, 1>, scalar_prefetch = 0 : i64, scratch_operands = 3 : i64, tpu.core_type = #tpu.core_type<tc>, window_params = [{transform_indices = @transform_0, window_bounds = array<i64: 8, 256>}, {transform_indices = @transform_1, window_bounds = array<i64: 8, 256>}, {transform_indices = @transform_2, window_bounds = array<i64: 3, 8, 128>}]} {
    %c0_i32 = arith.constant 0 : i32
    %0 = arith.cmpi eq, %arg1, %c0_i32 : i32
    %1 = arith.extui %0 : i1 to i32
    %c0_i32_0 = arith.constant 0 : i32
    %2 = arith.cmpi ne, %1, %c0_i32_0 : i32
    scf.if %2 {
      %cst = arith.constant 0.000000e+00 : f32
      %32 = vector.broadcast %cst : f32 to vector<8x128xf32>
      %c0_20 = arith.constant 0 : index
      %c0_21 = arith.constant 0 : index
      %33 = vector.load %arg5[%c0_20, %c0_21] : memref<8x128xf32, #tpu.memory_space<vmem>>, vector<8x128xf32>
      tpu.vector_store %arg5[%c0_20, %c0_21], %32 {strides = array<i32>} : memref<8x128xf32, #tpu.memory_space<vmem>>, vector<8x128xf32>,
      %cst_22 = arith.constant 0.000000e+00 : f32
      %34 = vector.broadcast %cst_22 : f32 to vector<8x128xf32>
      %c0_23 = arith.constant 0 : index
      %c0_24 = arith.constant 0 : index
      %35 = vector.load %arg6[%c0_23, %c0_24] : memref<8x128xf32, #tpu.memory_space<vmem>>, vector<8x128xf32>
      tpu.vector_store %arg6[%c0_23, %c0_24], %34 {strides = array<i32>} : memref<8x128xf32, #tpu.memory_space<vmem>>, vector<8x128xf32>,
      %cst_25 = arith.constant 0.000000e+00 : f32
      %36 = vector.broadcast %cst_25 : f32 to vector<8x128xf32>
      %c0_26 = arith.constant 0 : index
      %c0_27 = arith.constant 0 : index
      %37 = vector.load %arg7[%c0_26, %c0_27] : memref<8x128xf32, #tpu.memory_space<vmem>>, vector<8x128xf32>
      tpu.vector_store %arg7[%c0_26, %c0_27], %36 {strides = array<i32>} : memref<8x128xf32, #tpu.memory_space<vmem>>, vector<8x128xf32>,
    } else {
    }
    %c0 = arith.constant 0 : index
    %c0_1 = arith.constant 0 : index
    %3 = vector.load %arg5[%c0, %c0_1] : memref<8x128xf32, #tpu.memory_space<vmem>>, vector<8x128xf32>
    %c0_2 = arith.constant 0 : index
    %c0_3 = arith.constant 0 : index
    %4 = vector.load %arg6[%c0_2, %c0_3] : memref<8x128xf32, #tpu.memory_space<vmem>>, vector<8x128xf32>
    %c0_4 = arith.constant 0 : index
    %c0_5 = arith.constant 0 : index
    %5 = vector.load %arg7[%c0_4, %c0_5] : memref<8x128xf32, #tpu.memory_space<vmem>>, vector<8x128xf32>
    %c0_i32_6 = arith.constant 0 : i32
    %c128_i32 = arith.constant 128 : i32
    %6 = arith.muli %c0_i32_6, %c128_i32 : i32
    %7 = tpu.assume_multiple %6, 128 : i32
    %c0_7 = arith.constant 0 : index
    %8 = arith.index_cast %7 : i32 to index
    %9 = vector.load %arg2[%c0_7, %8] : memref<8x256xf32, #tpu.memory_space<vmem>>, vector<8x128xf32>
    %c0_8 = arith.constant 0 : index
    %10 = arith.index_cast %7 : i32 to index
    %11 = vector.load %arg3[%c0_8, %10] : memref<8x256xf32, #tpu.memory_space<vmem>>, vector<8x128xf32>
    %12 = arith.mulf %9, %11 : vector<8x128xf32>
    %13 = arith.addf %3, %12 : vector<8x128xf32>
    %14 = arith.addf %4, %9 : vector<8x128xf32>
    %15 = arith.addf %5, %11 : vector<8x128xf32>
    %c1_i32 = arith.constant 1 : i32
    %c128_i32_9 = arith.constant 128 : i32
    %16 = arith.muli %c1_i32, %c128_i32_9 : i32
    %17 = tpu.assume_multiple %16, 128 : i32
    %c0_10 = arith.constant 0 : index
    %18 = arith.index_cast %17 : i32 to index
    %19 = vector.load %arg2[%c0_10, %18] : memref<8x256xf32, #tpu.memory_space<vmem>>, vector<8x128xf32>
    %c0_11 = arith.constant 0 : index
    %20 = arith.index_cast %17 : i32 to index
    %21 = vector.load %arg3[%c0_11, %20] : memref<8x256xf32, #tpu.memory_space<vmem>>, vector<8x128xf32>
    %22 = arith.mulf %19, %21 : vector<8x128xf32>
    %23 = arith.addf %13, %22 : vector<8x128xf32>
    %24 = arith.addf %14, %19 : vector<8x128xf32>
    %25 = arith.addf %15, %21 : vector<8x128xf32>
    %c2_i32 = arith.constant 2 : i32
    %c0_12 = arith.constant 0 : index
    %c0_13 = arith.constant 0 : index
    %26 = vector.load %arg5[%c0_12, %c0_13] : memref<8x128xf32, #tpu.memory_space<vmem>>, vector<8x128xf32>
    tpu.vector_store %arg5[%c0_12, %c0_13], %23 {strides = array<i32>} : memref<8x128xf32, #tpu.memory_space<vmem>>, vector<8x128xf32>,
    %c0_14 = arith.constant 0 : index
    %c0_15 = arith.constant 0 : index
    %27 = vector.load %arg6[%c0_14, %c0_15] : memref<8x128xf32, #tpu.memory_space<vmem>>, vector<8x128xf32>
    tpu.vector_store %arg6[%c0_14, %c0_15], %24 {strides = array<i32>} : memref<8x128xf32, #tpu.memory_space<vmem>>, vector<8x128xf32>,
    %c0_16 = arith.constant 0 : index
    %c0_17 = arith.constant 0 : index
    %28 = vector.load %arg7[%c0_16, %c0_17] : memref<8x128xf32, #tpu.memory_space<vmem>>, vector<8x128xf32>
    tpu.vector_store %arg7[%c0_16, %c0_17], %25 {strides = array<i32>} : memref<8x128xf32, #tpu.memory_space<vmem>>, vector<8x128xf32>,
    %c0_i32_18 = arith.constant 0 : i32
    %29 = arith.cmpi eq, %arg1, %c0_i32_18 : i32
    %30 = arith.extui %29 : i1 to i32
    %c0_i32_19 = arith.constant 0 : i32
    %31 = arith.cmpi ne, %30, %c0_i32_19 : i32
    scf.if %31 {
      %c0_20 = arith.constant 0 : index
      %c0_21 = arith.constant 0 : index
      %32 = vector.load %arg5[%c0_20, %c0_21] : memref<8x128xf32, #tpu.memory_space<vmem>>, vector<8x128xf32>
      %c0_22 = arith.constant 0 : index
      %c0_23 = arith.constant 0 : index
      %c0_24 = arith.constant 0 : index
      %33 = vector.load %arg4[%c0_22, %c0_23, %c0_24] : memref<3x8x128xf32, #tpu.memory_space<vmem>>, vector<1x8x128xf32>
      %34 = vector.shape_cast %33 : vector<1x8x128xf32> to vector<8x128xf32>
      %35 = vector.shape_cast %32 : vector<8x128xf32> to vector<1x8x128xf32>
      tpu.vector_store %arg4[%c0_22, %c0_23, %c0_24], %35 {strides = array<i32>} : memref<3x8x128xf32, #tpu.memory_space<vmem>>, vector<1x8x128xf32>,
      %c0_25 = arith.constant 0 : index
      %c0_26 = arith.constant 0 : index
      %36 = vector.load %arg6[%c0_25, %c0_26] : memref<8x128xf32, #tpu.memory_space<vmem>>, vector<8x128xf32>
      %c1 = arith.constant 1 : index
      %c0_27 = arith.constant 0 : index
      %c0_28 = arith.constant 0 : index
      %37 = vector.load %arg4[%c1, %c0_27, %c0_28] : memref<3x8x128xf32, #tpu.memory_space<vmem>>, vector<1x8x128xf32>
      %38 = vector.shape_cast %37 : vector<1x8x128xf32> to vector<8x128xf32>
      %39 = vector.shape_cast %36 : vector<8x128xf32> to vector<1x8x128xf32>
      tpu.vector_store %arg4[%c1, %c0_27, %c0_28], %39 {strides = array<i32>} : memref<3x8x128xf32, #tpu.memory_space<vmem>>, vector<1x8x128xf32>,
      %c0_29 = arith.constant 0 : index
      %c0_30 = arith.constant 0 : index
      %40 = vector.load %arg7[%c0_29, %c0_30] : memref<8x128xf32, #tpu.memory_space<vmem>>, vector<8x128xf32>
      %c2 = arith.constant 2 : index
      %c0_31 = arith.constant 0 : index
      %c0_32 = arith.constant 0 : index
      %41 = vector.load %arg4[%c2, %c0_31, %c0_32] : memref<3x8x128xf32, #tpu.memory_space<vmem>>, vector<1x8x128xf32>
      %42 = vector.shape_cast %41 : vector<1x8x128xf32> to vector<8x128xf32>
      %43 = vector.shape_cast %40 : vector<8x128xf32> to vector<1x8x128xf32>
      tpu.vector_store %arg4[%c2, %c0_31, %c0_32], %43 {strides = array<i32>} : memref<3x8x128xf32, #tpu.memory_space<vmem>>, vector<1x8x128xf32>,
    } else {
    }
    return
  }
  func.func @transform_0(%arg0: i32, %arg1: i32) -> (i32, i32) {
    %c1_i32 = arith.constant 1 : i32
    %0 = arith.muli %arg0, %c1_i32 : i32
    %1 = arith.addi %0, %arg1 : i32
    %c0_i32 = arith.constant 0 : i32
    %c0_i32_0 = arith.constant 0 : i32
    return %c0_i32, %1 : i32, i32
  }
  func.func @transform_1(%arg0: i32, %arg1: i32) -> (i32, i32) {
    %c1_i32 = arith.constant 1 : i32
    %0 = arith.muli %arg0, %c1_i32 : i32
    %1 = arith.addi %0, %arg1 : i32
    %c0_i32 = arith.constant 0 : i32
    %c0_i32_0 = arith.constant 0 : i32
    return %c0_i32, %1 : i32, i32
  }
  func.func @transform_2(%arg0: i32, %arg1: i32) -> (i32, i32, i32) {
    %c0_i32 = arith.constant 0 : i32
    %c0_i32_0 = arith.constant 0 : i32
    %c0_i32_1 = arith.constant 0 : i32
    return %arg0, %c0_i32, %c0_i32_0 : i32, i32, i32
  }
}

</mosaic_0001>

<llo_original>
// kernel: tpu_custom_call.1
$region0: #{tpu_custom_call.1}
  #allocation0 [shape = 'u32[]', space=smem, size = 0x4, offset = 0x4, fixed_abs, tag = 'smem constant byte address 0x4 - core index']
  #allocation1 [shape = 'u32[144,128]{1,0:T(1,128)}', space=vmem, size = 0x12000, scoped, tag = 'internal scratch']
  #allocation2 [shape = 'f32[8,128]{1,0:T(8,128)}', space=vmem, size = 0x1000, scoped, tag = 'scratch operand']
  #allocation3 [shape = 'f32[8,128]{1,0:T(8,128)}', space=vmem, size = 0x1000, scoped, tag = 'scratch operand']
  #allocation4 [shape = 'f32[8,128]{1,0:T(8,128)}', space=vmem, size = 0x1000, scoped, tag = 'scratch operand']
  %s0 = inlined_call_operand.hbm [shape: f32[8,256], index: 0, kind: input, shape index: {}]
  %s1 = inlined_call_operand.hbm [shape: f32[8,256], index: 1, kind: input, shape index: {}]
  %s2 = inlined_call_operand.hbm [shape: f32[3,8,128], index: 2, kind: output, shape index: {}]
  %s3 = sld [smem:[#allocation0]]
  $region34: #{tpu_custom_call.1} parent=0
    _
  %s5 = ssub.s32 1, %s3
  %s6 = scalar_select 0, %s5, %s3
  $region1: #{tpu_custom_call.1} parent=0
    #allocation5 [shape = 'u8[8192]{0}', space=vmem, size = 0x2000, scoped, tag = 'input window, operand 0, single buffered']
    #allocation6 [shape = 's32[1]{0}', space=sflag, size = 0x4, scoped, tag = 'scoped memory for tpu_custom_call.1']
    #allocation7 [shape = 's32[1]{0}', space=sflag, size = 0x4, scoped, tag = 'scoped memory for tpu_custom_call.1']
    #allocation8 [shape = 'u8[8192]{0}', space=vmem, size = 0x2000, scoped, tag = 'input window, operand 1, single buffered']
    #allocation9 [shape = 's32[1]{0}', space=sflag, size = 0x4, scoped, tag = 'scoped memory for tpu_custom_call.1']
    #allocation10 [shape = 'u8[12288]{0}', space=vmem, size = 0x3000, scoped, tag = 'output window, operand 0, single buffered']
    %7 = vsyncpa [#allocation6], 0
    %8 = vsyncpa [#allocation9], 0
    %9 = vsyncpa [#allocation7], 0
    // Predicated region
    $region2: #{tpu_custom_call.1} parent=1 // pred_check
      _
    $region3: #{tpu_custom_call.1} parent=1 // pred_check_branch
      %11 = sbr.rel (0) target = $region5
    $region4: #{tpu_custom_call.1} parent=1 // pred_region
      %s12 = sadd.s32 0, 0
      %s13 = smul.u32 2, %s12
      %s15 = ssub.s32 256, 256
      %16 = vsyncadd [#allocation6], %s15
      %s17 = smul.addr %s13, 128
      %s18 = scalar_lea.hbm %s0, %s17
      %s20 = sshll.u32 [#allocation5], 4
      %s21 = int_to_ptr.vmem [resolvable:$true] %s20
      %23 = dma.hbm_to_vmem [thread:$0]  %s18, 256, %s21, [#allocation6]
    $region5: #{tpu_custom_call.1} parent=1 // pred_fallthru
      _
    // Predicated region
    $region6: #{tpu_custom_call.1} parent=1 // pred_check
      _
    $region7: #{tpu_custom_call.1} parent=1 // pred_check_branch
      %25 = sbr.rel (0) target = $region9
    $region8: #{tpu_custom_call.1} parent=1 // pred_region
      %s26 = sadd.s32 0, 0
      %s27 = smul.u32 2, %s26
      %s29 = ssub.s32 256, 256
      %30 = vsyncadd [#allocation9], %s29
      %s31 = smul.addr %s27, 128
      %s32 = scalar_lea.hbm %s1, %s31
      %s34 = sshll.u32 [#allocation8], 4
      %s35 = int_to_ptr.vmem [resolvable:$true] %s34
      %37 = dma.hbm_to_vmem [thread:$0]  %s32, 256, %s35, [#allocation9]
    $region9: #{tpu_custom_call.1} parent=1 // pred_fallthru
      _
    // Predicated region
    $region10: #{tpu_custom_call.1} parent=1 // pred_check
      _
    $region11: #{tpu_custom_call.1} parent=1 // pred_check_branch
      %39 = sbr.rel (0) target = $region13
    $region12: #{tpu_custom_call.1} parent=1 // pred_region
      %40 = dma.done [#allocation6], 256
    $region13: #{tpu_custom_call.1} parent=1 // pred_fallthru
      _
    // Predicated region
    $region14: #{tpu_custom_call.1} parent=1 // pred_check
      _
    $region15: #{tpu_custom_call.1} parent=1 // pred_check_branch
      %42 = sbr.rel (0) target = $region17
    $region16: #{tpu_custom_call.1} parent=1 // pred_region
      %43 = dma.done [#allocation9], 256
    $region17: #{tpu_custom_call.1} parent=1 // pred_fallthru
      _
    %s44 = sadd.s32 0, 0
    %s45 = smul.u32 2, %s44
    %s46 = sadd.s32 0, 0
    %s47 = smul.u32 2, %s46
    %p48 = scmp.eq.s32.totalorder 0, 0
    // Predicated region
    $region18: #{tpu_custom_call.1} parent=1 // pred_check
      %p49 = pneg %p48
    $region19: #{tpu_custom_call.1} parent=1 // pred_check_branch
      %51 = sbr.rel (%p49) target = $region21
    $region20: #{tpu_custom_call.1} parent=1 // pred_region
      %52 = vst [vmem:[#allocation2] sm:$0xff] 0.0
      %53 = vst [vmem:[#allocation3] sm:$0xff] 0.0
      %54 = vst [vmem:[#allocation4] sm:$0xff] 0.0
    $region21: #{tpu_custom_call.1} parent=1 // pred_fallthru
      _
    %v55 = vld [vmem:[#allocation2] sm:$0xff]
    %v56 = vld [vmem:[#allocation3] sm:$0xff]
    %v57 = vld [vmem:[#allocation4] sm:$0xff]
    %v58 = vld [vmem:[#allocation5] sm:$0xff]
    %v59 = vld [vmem:[#allocation8] sm:$0xff]
    %v60 = vmul.f32 %v58, %v59
    %v61 = vadd.f32 %v55, %v60
    %v62 = vadd.f32 %v56, %v58
    %v63 = vadd.f32 %v57, %v59
    %s64 = scalar_lea.vmem [#allocation5], 8
    %v65 = vld [vmem:[%s64] sm:$0xff]
    %s66 = scalar_lea.vmem [#allocation8], 8
    %v67 = vld [vmem:[%s66] sm:$0xff]
    %v68 = vmul.f32 %v65, %v67
    %v69 = vadd.f32 %v61, %v68
    %v70 = vadd.f32 %v62, %v65
    %v71 = vadd.f32 %v63, %v67
    %72 = vst [vmem:[#allocation2] sm:$0xff] %v69
    %73 = vst [vmem:[#allocation3] sm:$0xff] %v70
    %74 = vst [vmem:[#allocation4] sm:$0xff] %v71
    // Predicated region
    $region22: #{tpu_custom_call.1} parent=1 // pred_check
      %p75 = pneg %p48
    $region23: #{tpu_custom_call.1} parent=1 // pred_check_branch
      %77 = sbr.rel (%p75) target = $region25
    $region24: #{tpu_custom_call.1} parent=1 // pred_region
      %v78 = vld [vmem:[#allocation2] sm:$0xff]
      %79 = vst [vmem:[#allocation10] sm:$0xff] %v78
      %v80 = vld [vmem:[#allocation3] sm:$0xff]
      %s81 = scalar_lea.vmem [#allocation10], 8
      %82 = vst [vmem:[%s81] sm:$0xff] %v80
      %v83 = vld [vmem:[#allocation4] sm:$0xff]
      %s84 = scalar_lea.vmem [#allocation10], 16
      %85 = vst [vmem:[%s84] sm:$0xff] %v83
    $region25: #{tpu_custom_call.1} parent=1 // pred_fallthru
      _
    // Predicated region
    $region26: #{tpu_custom_call.1} parent=1 // pred_check
      _
    $region27: #{tpu_custom_call.1} parent=1 // pred_check_branch
      %87 = sbr.rel (0) target = $region29
    $region28: #{tpu_custom_call.1} parent=1 // pred_region
      %s89 = ssub.s32 384, 384
      %90 = vsyncadd [#allocation7], %s89
      %s91 = sshll.u32 [#allocation10], 4
      %s92 = int_to_ptr.vmem [resolvable:$true] %s91
      %97 = dma.vmem_to_hbm [thread:$0]  %s92, 384, %s2, [#allocation7], 128, 128, 8
    $region29: #{tpu_custom_call.1} parent=1 // pred_fallthru
      _
    // Predicated region
    $region30: #{tpu_custom_call.1} parent=1 // pred_check
      _
    $region31: #{tpu_custom_call.1} parent=1 // pred_check_branch
      %99 = sbr.rel (0) target = $region33
    $region32: #{tpu_custom_call.1} parent=1 // pred_region
      %100 = dma.done [#allocation7], 384
    $region33: #{tpu_custom_call.1} parent=1 // pred_fallthru
      _
    %101 = vsyncpa [#allocation6], 1
    %102 = vsyncpa [#allocation9], 1
    %103 = vsyncpa [#allocation7], 1

</llo_original>
